<compile_context>
chip_gen: v7x
topology: tpu7x:2x2x1
jax: 0.10.0
libtpu: 0.0.40
codegen_flags: <defaults>
</compile_context>

<pallas_src>
import math

import jax
import jax.numpy as jnp
from jax import lax
from jax.experimental import pallas as pl
from jax.experimental.pallas import tpu as pltpu

# ------------------------------ synthetic cfg -------------------------------
HIDDEN = 32                      # cfg.decoder.hidden_size
NUM_HEADS = 4                    # cfg.decoder.num_heads
HEAD_DIM = HIDDEN // NUM_HEADS   # sinusoidal embedding dim (8)
NUM_LAYERS = 2                   # cfg.decoder.num_layers (layer stack itself is TODO)
PEPTIDE_MAX_LEN = 16             # cfg.data.peptide_max_len
MOVERZ_LAMBDA_MAX = 1.0e4        # cfg.embedding.moverz_lambda_max
MOVERZ_LAMBDA_MIN = 1.0e-4       # cfg.embedding.moverz_lambda_min
OUTPUT_DTYPE = jnp.float32

_HD = NUM_HEADS * HEAD_DIM       # lanes per m/z value after head replication (32)
_HALF = HEAD_DIM // 2            # number of distinct frequencies (4)
# 1/div_term with div_term = (l_max/2pi) * (l_min/l_max)^(2i/D)  -> compile-time floats
_INV_DIV = tuple(
    (2.0 * math.pi / MOVERZ_LAMBDA_MAX)
    * (MOVERZ_LAMBDA_MAX / MOVERZ_LAMBDA_MIN) ** (i / _HALF)
    for i in range(_HALF))


# ------------------------------- kernel --------------------------------------
def _mod_const(x, m):
    """x % m for a compile-time positive int m (bitwise AND when m is a power of 2)."""
    if (m & (m - 1)) == 0:
        return jnp.bitwise_and(x, m - 1)
    return jnp.remainder(x, m)


def _mz_sinusoid(mz_col, out_ref):
    """Sinusoidal m/z embedding, head replication folded in.

    mz_col  : [B, M, 1] f32 (one lane per position; lane-broadcast is free)
    out_ref : [B, M, H*D]; per head: [sin(mz/div_0..), cos(mz/div_0..)]
              (block-split sin|cos convention, identical per head ==
               stack(dim=-2) + repeat_interleave(num_heads) of the torch module).
    cos(x) == sin(x + pi/2): a single EUP sine covers both halves.
    """
    shape = out_ref.shape
    k = lax.broadcasted_iota(jnp.int32, shape, len(shape) - 1)     # lane id 0..HD-1
    j = _mod_const(k, HEAD_DIM)                                    # lane within a head
    fidx = _mod_const(j, _HALF)                                    # frequency index
    inv = jnp.full(shape, _INV_DIV[-1], dtype=jnp.float32)
    for i in range(_HALF - 1):                                     # 3 selects (VPU)
        inv = jnp.where(fidx == i, jnp.float32(_INV_DIV[i]), inv)
    off = jnp.where(j >= _HALF, jnp.float32(math.pi / 2.0), jnp.float32(0.0))
    phase = mz_col.astype(jnp.float32) * inv + off                 # VPU only
    out_ref[...] = jnp.sin(phase).astype(out_ref.dtype)            # one EUP sine


def _fused_decoder_input_kernel(sm_ref, pk_ref, tgt_ref, pos_ref, table_ref,
                                sm_embed_ref, pk_embed_ref, tgt_out_ref):
    """Fused RNovaDecoder input stage (single invocation, no grid).

    sm_ref        : [B, L, 1]       step_mass          (VMEM)
    pk_ref        : [B, Npeak, 1]   peak_mzs           (VMEM)
    tgt_ref       : [B, L*E]        tgt, lane-dense    (VMEM)
    pos_ref       : [B, L] int32    positional indices (SMEM scalars)
    table_ref     : [P, E]          pos-embedding table (VMEM)
    sm_embed_ref  : [B, L, H*D]     step_mass sinusoid embedding
    pk_embed_ref  : [B, Npeak, H*D] peak m/z sinusoid embedding
    tgt_out_ref   : [B, L*E]        tgt + table[pos], lane-dense
    """
    # ---- sinusoidal m/z embeddings (constants baked, replication in-kernel) ----
    _mz_sinusoid(sm_ref[...], sm_embed_ref)
    _mz_sinusoid(pk_ref[...], pk_embed_ref)

    # ---- tgt + embedding_table[pos]: scalar-driven row gather (no MXU) ----
    # Precondition: pos in [0, P).  An OOB index reads adjacent VMEM silently
    # (nn.Embedding would raise); callers must keep pos in range.
    B, L = pos_ref.shape
    E = table_ref.shape[1]
    for b in range(B):                       # statically unrolled: B*L = 16 rows
        for l in range(L):
            p = pos_ref[b, l]                # SMEM scalar read
            col = l * E                      # static lane offset
            tgt_out_ref[b, pl.ds(col, E)] = (
                tgt_ref[b, pl.ds(col, E)] + table_ref[p, :])


# ------------------------------- wrapper --------------------------------------
def rnova_decoder_forward(tgt, step_mass, pos, graph_node, peak_mzs, pos_table):
    """RNovaDecoder.forward. Returns (tgt, (step_mass_embed, peak_mzs_embed)).

    The PyTorch module returns only `tgt`; the mass embeddings are returned as
    auxiliary outputs so the sinusoidal path (which feeds the TODO decoder layers)
    is observable.
    """
    if pos.dtype != jnp.int32:
        raise TypeError("pos must be int32 (caller precondition; no in-kernel cast)")
    B, L, E = tgt.shape
    Npeak = peak_mzs.shape[1]

    # Wrapper-side reshapes are contiguous row-major -> XLA bitcasts (no copies,
    # no extra dispatches).
    sm3 = step_mass.astype(jnp.float32).reshape(B, L, 1)
    pk3 = peak_mzs.astype(jnp.float32).reshape(B, Npeak, 1)
    tgt_flat = tgt.reshape(B, L * E)

    vmem = pl.BlockSpec(memory_space=pltpu.MemorySpace.VMEM)
    smem = pl.BlockSpec(memory_space=pltpu.MemorySpace.SMEM)

    sm_embed, pk_embed, tgt_out_flat = pl.pallas_call(
        _fused_decoder_input_kernel,
        out_shape=(
            jax.ShapeDtypeStruct((B, L, _HD), OUTPUT_DTYPE),
            jax.ShapeDtypeStruct((B, Npeak, _HD), OUTPUT_DTYPE),
            jax.ShapeDtypeStruct((B, L * E), tgt.dtype),
        ),
        in_specs=[vmem, vmem, vmem, smem, vmem],
        out_specs=(vmem, vmem, vmem),
    )(sm3, pk3, tgt_flat, pos, pos_table)

    # Free (contiguous) reshapes back to the module's layouts.
    step_mass_embed = sm_embed.reshape(B, L, NUM_HEADS, HEAD_DIM)
    peak_mzs_embed = pk_embed.reshape(B, Npeak, NUM_HEADS, HEAD_DIM)
    tgt_out = tgt_out_flat.reshape(B, L, E)

    # TODO(synk): loop over NUM_LAYERS RNovaDecoderLayer(tgt, step_mass_embed,
    # mem=graph_node, peak_mzs_embed) -- layer class not provided in the spec.
    del graph_node
    return tgt_out, (step_mass_embed, peak_mzs_embed)


# ------------------------------ reference (test) ------------------------------
def _ref_mass_embed(mz):
    """Plain-JAX reference for RelativeInputEmbedding (block-split sin|cos per head)."""
    inv_div = jnp.asarray(_INV_DIV, dtype=jnp.float32)
    ph = mz[..., None].astype(jnp.float32) * inv_div                    # [B, M, D/2]
    e = jnp.concatenate([jnp.sin(ph), jnp.cos(ph)], axis=-1)            # [B, M, D]
    return jnp.broadcast_to(e[:, :, None, :], (*mz.shape, NUM_HEADS, HEAD_DIM))


# --------------------------------- main ---------------------------------------
if __name__ == "__main__":
    key = jax.random.PRNGKey(0)
    k1, k2, k3, k4, k5, k6 = jax.random.split(key, 6)

    B, L, NPEAK = 2, 8, 16
    tgt = jax.random.normal(k1, (B, L, HIDDEN), dtype=jnp.float32)
    step_mass = jax.random.uniform(k2, (B, L), dtype=jnp.float32,
                                   minval=0.0, maxval=2000.0)
    peak_mzs = jax.random.uniform(k3, (B, NPEAK), dtype=jnp.float32,
                                  minval=0.0, maxval=2000.0)
    graph_node = jax.random.normal(k4, (B, NPEAK, HIDDEN), dtype=jnp.float32)
    pos_table = 0.02 * jax.random.normal(k5, (PEPTIDE_MAX_LEN, HIDDEN),
                                         dtype=jnp.float32)
    pos = jax.random.randint(k6, (B, L), 0, PEPTIDE_MAX_LEN, dtype=jnp.int32)

    fwd = jax.jit(rnova_decoder_forward)
    out, (sm_embed, pk_embed) = fwd(tgt, step_mass, pos, graph_node, peak_mzs,
                                    pos_table)
    jax.block_until_ready((out, sm_embed, pk_embed))

    # shape checks
    assert out.shape == (B, L, HIDDEN)
    assert sm_embed.shape == (B, L, NUM_HEADS, HEAD_DIM)
    assert pk_embed.shape == (B, NPEAK, NUM_HEADS, HEAD_DIM)

    # positional gather + add is (near-)exact vs. plain-JAX gather + add
    ref_tgt = tgt + pos_table[pos]
    assert jnp.allclose(out, ref_tgt, atol=1e-5), float(
        jnp.max(jnp.abs(out - ref_tgt)))

    # sinusoid path: bounded and finite everywhere
    for emb in (sm_embed, pk_embed):
        assert bool(jnp.all(jnp.isfinite(emb)))
        assert float(jnp.max(jnp.abs(emb))) <= 1.0 + 1e-5

    # (a) realistic m/z (0..2000): compare the well-conditioned lanes (freqs 0-1,
    #     sin + cos).  Top frequencies see phases up to ~1e6 rad where f32 argument
    #     reduction dominates the error for kernel and reference alike.
    ok = jnp.asarray([0, 1, 4, 5], dtype=jnp.int32)
    ref_sm = _ref_mass_embed(step_mass)
    ref_pk = _ref_mass_embed(peak_mzs)
    err_sm = float(jnp.max(jnp.abs(sm_embed[..., ok] - ref_sm[..., ok])))
    err_pk = float(jnp.max(jnp.abs(pk_embed[..., ok] - ref_pk[..., ok])))
    assert err_sm < 5e-3, err_sm
    assert err_pk < 5e-3, err_pk

    # (b) small m/z (max phase ~1.3e3 rad): every lane is well-conditioned -> full check.
    _, (sm_small, pk_small) = fwd(tgt, step_mass * 1e-3, pos, graph_node,
                                  peak_mzs * 1e-3, pos_table)
    jax.block_until_ready((sm_small, pk_small))
    err_sm2 = float(jnp.max(jnp.abs(sm_small - _ref_mass_embed(step_mass * 1e-3))))
    err_pk2 = float(jnp.max(jnp.abs(pk_small - _ref_mass_embed(peak_mzs * 1e-3))))
    assert err_sm2 < 5e-3, err_sm2
    assert err_pk2 < 5e-3, err_pk2

    print("KERNEL_OK")
</pallas_src>

<mosaic_0001>
module attributes {stable_mosaic.version = 11 : i64} {
  func.func @_fused_decoder_input_kernel(%arg0: memref<2x8x1xf32, #tpu.memory_space<vmem>>, %arg1: memref<2x16x1xf32, #tpu.memory_space<vmem>>, %arg2: memref<2x256xf32, #tpu.memory_space<vmem>>, %arg3: memref<2x8xi32, #tpu.memory_space<smem>>, %arg4: memref<16x32xf32, #tpu.memory_space<vmem>>, %arg5: memref<2x8x32xf32, #tpu.memory_space<vmem>>, %arg6: memref<2x16x32xf32, #tpu.memory_space<vmem>>, %arg7: memref<2x256xf32, #tpu.memory_space<vmem>>) attributes {dimension_semantics = [], scalar_prefetch = 0 : i64, scratch_operands = 0 : i64, tpu.core_type = #tpu.core_type<tc>} {
    %c0 = arith.constant 0 : index
    %c0_0 = arith.constant 0 : index
    %c0_1 = arith.constant 0 : index
    %0 = vector.load %arg0[%c0, %c0_0, %c0_1] : memref<2x8x1xf32, #tpu.memory_space<vmem>>, vector<2x8x1xf32>
    %1 = tpu.iota {dimensions = array<i32: 2>} : vector<2x8x32xi32>
    %c7_i32 = arith.constant 7 : i32
    %2 = vector.broadcast %c7_i32 : i32 to vector<2x8x32xi32>
    %3 = arith.andi %1, %2 : vector<2x8x32xi32>
    %c3_i32 = arith.constant 3 : i32
    %4 = vector.broadcast %c3_i32 : i32 to vector<2x8x32xi32>
    %5 = arith.andi %3, %4 : vector<2x8x32xi32>
    %cst = arith.constant 628.318542 : f32
    %6 = vector.broadcast %cst : f32 to vector<2x8x32xf32>
    %c0_i32 = arith.constant 0 : i32
    %7 = vector.broadcast %c0_i32 : i32 to vector<2x8x32xi32>
    %8 = arith.cmpi eq, %5, %7 : vector<2x8x32xi32>
    %cst_2 = arith.constant 6.28318521E-4 : f32
    %9 = vector.broadcast %cst_2 : f32 to vector<2x8x32xf32>
    %10 = arith.select %8, %9, %6 : vector<2x8x32xi1>, vector<2x8x32xf32>
    %c1_i32 = arith.constant 1 : i32
    %11 = vector.broadcast %c1_i32 : i32 to vector<2x8x32xi32>
    %12 = arith.cmpi eq, %5, %11 : vector<2x8x32xi32>
    %cst_3 = arith.constant 0.0628318563 : f32
    %13 = vector.broadcast %cst_3 : f32 to vector<2x8x32xf32>
    %14 = arith.select %12, %13, %10 : vector<2x8x32xi1>, vector<2x8x32xf32>
    %c2_i32 = arith.constant 2 : i32
    %15 = vector.broadcast %c2_i32 : i32 to vector<2x8x32xi32>
    %16 = arith.cmpi eq, %5, %15 : vector<2x8x32xi32>
    %cst_4 = arith.constant 6.28318548 : f32
    %17 = vector.broadcast %cst_4 : f32 to vector<2x8x32xf32>
    %18 = arith.select %16, %17, %14 : vector<2x8x32xi1>, vector<2x8x32xf32>
    %c4_i32 = arith.constant 4 : i32
    %19 = vector.broadcast %c4_i32 : i32 to vector<2x8x32xi32>
    %20 = arith.cmpi sge, %3, %19 : vector<2x8x32xi32>
    %cst_5 = arith.constant 1.57079637 : f32
    %cst_6 = arith.constant 0.000000e+00 : f32
    %21 = vector.broadcast %cst_5 : f32 to vector<2x8x32xf32>
    %22 = vector.broadcast %cst_6 : f32 to vector<2x8x32xf32>
    %23 = arith.select %20, %21, %22 : vector<2x8x32xi1>, vector<2x8x32xf32>
    %24 = vector.broadcast %0 : vector<2x8x1xf32> to vector<2x8x32xf32>
    %25 = arith.mulf %24, %18 : vector<2x8x32xf32>
    %26 = arith.addf %25, %23 : vector<2x8x32xf32>
    %27 = math.sin %26 : vector<2x8x32xf32>
    %c0_7 = arith.constant 0 : index
    %c0_8 = arith.constant 0 : index
    %c0_9 = arith.constant 0 : index
    %28 = vector.load %arg5[%c0_7, %c0_8, %c0_9] : memref<2x8x32xf32, #tpu.memory_space<vmem>>, vector<2x8x32xf32>
    tpu.vector_store %arg5[%c0_7, %c0_8, %c0_9], %27 {strides = array<i32>} : memref<2x8x32xf32, #tpu.memory_space<vmem>>, vector<2x8x32xf32>,
    %c0_10 = arith.constant 0 : index
    %c0_11 = arith.constant 0 : index
    %c0_12 = arith.constant 0 : index
    %29 = vector.load %arg1[%c0_10, %c0_11, %c0_12] : memref<2x16x1xf32, #tpu.memory_space<vmem>>, vector<2x16x1xf32>
    %30 = tpu.iota {dimensions = array<i32: 2>} : vector<2x16x32xi32>
    %c7_i32_13 = arith.constant 7 : i32
    %31 = vector.broadcast %c7_i32_13 : i32 to vector<2x16x32xi32>
    %32 = arith.andi %30, %31 : vector<2x16x32xi32>
    %c3_i32_14 = arith.constant 3 : i32
    %33 = vector.broadcast %c3_i32_14 : i32 to vector<2x16x32xi32>
    %34 = arith.andi %32, %33 : vector<2x16x32xi32>
    %cst_15 = arith.constant 628.318542 : f32
    %35 = vector.broadcast %cst_15 : f32 to vector<2x16x32xf32>
    %c0_i32_16 = arith.constant 0 : i32
    %36 = vector.broadcast %c0_i32_16 : i32 to vector<2x16x32xi32>
    %37 = arith.cmpi eq, %34, %36 : vector<2x16x32xi32>
    %cst_17 = arith.constant 6.28318521E-4 : f32
    %38 = vector.broadcast %cst_17 : f32 to vector<2x16x32xf32>
    %39 = arith.select %37, %38, %35 : vector<2x16x32xi1>, vector<2x16x32xf32>
    %c1_i32_18 = arith.constant 1 : i32
    %40 = vector.broadcast %c1_i32_18 : i32 to vector<2x16x32xi32>
    %41 = arith.cmpi eq, %34, %40 : vector<2x16x32xi32>
    %cst_19 = arith.constant 0.0628318563 : f32
    %42 = vector.broadcast %cst_19 : f32 to vector<2x16x32xf32>
    %43 = arith.select %41, %42, %39 : vector<2x16x32xi1>, vector<2x16x32xf32>
    %c2_i32_20 = arith.constant 2 : i32
    %44 = vector.broadcast %c2_i32_20 : i32 to vector<2x16x32xi32>
    %45 = arith.cmpi eq, %34, %44 : vector<2x16x32xi32>
    %cst_21 = arith.constant 6.28318548 : f32
    %46 = vector.broadcast %cst_21 : f32 to vector<2x16x32xf32>
    %47 = arith.select %45, %46, %43 : vector<2x16x32xi1>, vector<2x16x32xf32>
    %c4_i32_22 = arith.constant 4 : i32
    %48 = vector.broadcast %c4_i32_22 : i32 to vector<2x16x32xi32>
    %49 = arith.cmpi sge, %32, %48 : vector<2x16x32xi32>
    %cst_23 = arith.constant 1.57079637 : f32
    %cst_24 = arith.constant 0.000000e+00 : f32
    %50 = vector.broadcast %cst_23 : f32 to vector<2x16x32xf32>
    %51 = vector.broadcast %cst_24 : f32 to vector<2x16x32xf32>
    %52 = arith.select %49, %50, %51 : vector<2x16x32xi1>, vector<2x16x32xf32>
    %53 = vector.broadcast %29 : vector<2x16x1xf32> to vector<2x16x32xf32>
    %54 = arith.mulf %53, %47 : vector<2x16x32xf32>
    %55 = arith.addf %54, %52 : vector<2x16x32xf32>
    %56 = math.sin %55 : vector<2x16x32xf32>
    %c0_25 = arith.constant 0 : index
    %c0_26 = arith.constant 0 : index
    %c0_27 = arith.constant 0 : index
    %57 = vector.load %arg6[%c0_25, %c0_26, %c0_27] : memref<2x16x32xf32, #tpu.memory_space<vmem>>, vector<2x16x32xf32>
    tpu.vector_store %arg6[%c0_25, %c0_26, %c0_27], %56 {strides = array<i32>} : memref<2x16x32xf32, #tpu.memory_space<vmem>>, vector<2x16x32xf32>,
    %c0_28 = arith.constant 0 : index
    %c0_29 = arith.constant 0 : index
    %58 = memref.load %arg3[%c0_28, %c0_29] : memref<2x8xi32, #tpu.memory_space<smem>>
    %c0_30 = arith.constant 0 : index
    %c0_31 = arith.constant 0 : index
    %59 = vector.load %arg2[%c0_30, %c0_31] : memref<2x256xf32, #tpu.memory_space<vmem>>, vector<1x32xf32>
    %60 = vector.shape_cast %59 : vector<1x32xf32> to vector<32xf32>
    %61 = arith.index_cast %58 : i32 to index
    %c0_32 = arith.constant 0 : index
    %62 = vector.load %arg4[%61, %c0_32] : memref<16x32xf32, #tpu.memory_space<vmem>>, vector<1x32xf32>
    %63 = vector.shape_cast %62 : vector<1x32xf32> to vector<32xf32>
    %64 = arith.addf %60, %63 : vector<32xf32>
    %c0_33 = arith.constant 0 : index
    %c0_34 = arith.constant 0 : index
    %65 = vector.load %arg7[%c0_33, %c0_34] : memref<2x256xf32, #tpu.memory_space<vmem>>, vector<1x32xf32>
    %66 = vector.shape_cast %65 : vector<1x32xf32> to vector<32xf32>
    %67 = vector.shape_cast %64 : vector<32xf32> to vector<1x32xf32>
    tpu.vector_store %arg7[%c0_33, %c0_34], %67 {strides = array<i32>} : memref<2x256xf32, #tpu.memory_space<vmem>>, vector<1x32xf32>,
    %c0_35 = arith.constant 0 : index
    %c1 = arith.constant 1 : index
    %68 = memref.load %arg3[%c0_35, %c1] : memref<2x8xi32, #tpu.memory_space<smem>>
    %c0_36 = arith.constant 0 : index
    %c32 = arith.constant 32 : index
    %69 = vector.load %arg2[%c0_36, %c32] : memref<2x256xf32, #tpu.memory_space<vmem>>, vector<1x32xf32>
    %70 = vector.shape_cast %69 : vector<1x32xf32> to vector<32xf32>
    %71 = arith.index_cast %68 : i32 to index
    %c0_37 = arith.constant 0 : index
    %72 = vector.load %arg4[%71, %c0_37] : memref<16x32xf32, #tpu.memory_space<vmem>>, vector<1x32xf32>
    %73 = vector.shape_cast %72 : vector<1x32xf32> to vector<32xf32>
    %74 = arith.addf %70, %73 : vector<32xf32>
    %c0_38 = arith.constant 0 : index
    %c32_39 = arith.constant 32 : index
    %75 = vector.load %arg7[%c0_38, %c32_39] : memref<2x256xf32, #tpu.memory_space<vmem>>, vector<1x32xf32>
    %76 = vector.shape_cast %75 : vector<1x32xf32> to vector<32xf32>
    %77 = vector.shape_cast %74 : vector<32xf32> to vector<1x32xf32>
    tpu.vector_store %arg7[%c0_38, %c32_39], %77 {strides = array<i32>} : memref<2x256xf32, #tpu.memory_space<vmem>>, vector<1x32xf32>,
    %c0_40 = arith.constant 0 : index
    %c2 = arith.constant 2 : index
    %78 = memref.load %arg3[%c0_40, %c2] : memref<2x8xi32, #tpu.memory_space<smem>>
    %c0_41 = arith.constant 0 : index
    %c64 = arith.constant 64 : index
    %79 = vector.load %arg2[%c0_41, %c64] : memref<2x256xf32, #tpu.memory_space<vmem>>, vector<1x32xf32>
    %80 = vector.shape_cast %79 : vector<1x32xf32> to vector<32xf32>
    %81 = arith.index_cast %78 : i32 to index
    %c0_42 = arith.constant 0 : index
    %82 = vector.load %arg4[%81, %c0_42] : memref<16x32xf32, #tpu.memory_space<vmem>>, vector<1x32xf32>
    %83 = vector.shape_cast %82 : vector<1x32xf32> to vector<32xf32>
    %84 = arith.addf %80, %83 : vector<32xf32>
    %c0_43 = arith.constant 0 : index
    %c64_44 = arith.constant 64 : index
    %85 = vector.load %arg7[%c0_43, %c64_44] : memref<2x256xf32, #tpu.memory_space<vmem>>, vector<1x32xf32>
    %86 = vector.shape_cast %85 : vector<1x32xf32> to vector<32xf32>
    %87 = vector.shape_cast %84 : vector<32xf32> to vector<1x32xf32>
    tpu.vector_store %arg7[%c0_43, %c64_44], %87 {strides = array<i32>} : memref<2x256xf32, #tpu.memory_space<vmem>>, vector<1x32xf32>,
    %c0_45 = arith.constant 0 : index
    %c3 = arith.constant 3 : index
    %88 = memref.load %arg3[%c0_45, %c3] : memref<2x8xi32, #tpu.memory_space<smem>>
    %c0_46 = arith.constant 0 : index
    %c96 = arith.constant 96 : index
    %89 = vector.load %arg2[%c0_46, %c96] : memref<2x256xf32, #tpu.memory_space<vmem>>, vector<1x32xf32>
    %90 = vector.shape_cast %89 : vector<1x32xf32> to vector<32xf32>
    %91 = arith.index_cast %88 : i32 to index
    %c0_47 = arith.constant 0 : index
    %92 = vector.load %arg4[%91, %c0_47] : memref<16x32xf32, #tpu.memory_space<vmem>>, vector<1x32xf32>
    %93 = vector.shape_cast %92 : vector<1x32xf32> to vector<32xf32>
    %94 = arith.addf %90, %93 : vector<32xf32>
    %c0_48 = arith.constant 0 : index
    %c96_49 = arith.constant 96 : index
    %95 = vector.load %arg7[%c0_48, %c96_49] : memref<2x256xf32, #tpu.memory_space<vmem>>, vector<1x32xf32>
    %96 = vector.shape_cast %95 : vector<1x32xf32> to vector<32xf32>
    %97 = vector.shape_cast %94 : vector<32xf32> to vector<1x32xf32>
    tpu.vector_store %arg7[%c0_48, %c96_49], %97 {strides = array<i32>} : memref<2x256xf32, #tpu.memory_space<vmem>>, vector<1x32xf32>,
    %c0_50 = arith.constant 0 : index
    %c4 = arith.constant 4 : index
    %98 = memref.load %arg3[%c0_50, %c4] : memref<2x8xi32, #tpu.memory_space<smem>>
    %c0_51 = arith.constant 0 : index
    %c128 = arith.constant 128 : index
    %99 = vector.load %arg2[%c0_51, %c128] : memref<2x256xf32, #tpu.memory_space<vmem>>, vector<1x32xf32>
    %100 = vector.shape_cast %99 : vector<1x32xf32> to vector<32xf32>
    %101 = arith.index_cast %98 : i32 to index
    %c0_52 = arith.constant 0 : index
    %102 = vector.load %arg4[%101, %c0_52] : memref<16x32xf32, #tpu.memory_space<vmem>>, vector<1x32xf32>
    %103 = vector.shape_cast %102 : vector<1x32xf32> to vector<32xf32>
    %104 = arith.addf %100, %103 : vector<32xf32>
    %c0_53 = arith.constant 0 : index
    %c128_54 = arith.constant 128 : index
    %105 = vector.load %arg7[%c0_53, %c128_54] : memref<2x256xf32, #tpu.memory_space<vmem>>, vector<1x32xf32>
    %106 = vector.shape_cast %105 : vector<1x32xf32> to vector<32xf32>
    %107 = vector.shape_cast %104 : vector<32xf32> to vector<1x32xf32>
    tpu.vector_store %arg7[%c0_53, %c128_54], %107 {strides = array<i32>} : memref<2x256xf32, #tpu.memory_space<vmem>>, vector<1x32xf32>,
    %c0_55 = arith.constant 0 : index
    %c5 = arith.constant 5 : index
    %108 = memref.load %arg3[%c0_55, %c5] : memref<2x8xi32, #tpu.memory_space<smem>>
    %c0_56 = arith.constant 0 : index
    %c160 = arith.constant 160 : index
    %109 = vector.load %arg2[%c0_56, %c160] : memref<2x256xf32, #tpu.memory_space<vmem>>, vector<1x32xf32>
    %110 = vector.shape_cast %109 : vector<1x32xf32> to vector<32xf32>
    %111 = arith.index_cast %108 : i32 to index
    %c0_57 = arith.constant 0 : index
    %112 = vector.load %arg4[%111, %c0_57] : memref<16x32xf32, #tpu.memory_space<vmem>>, vector<1x32xf32>
    %113 = vector.shape_cast %112 : vector<1x32xf32> to vector<32xf32>
    %114 = arith.addf %110, %113 : vector<32xf32>
    %c0_58 = arith.constant 0 : index
    %c160_59 = arith.constant 160 : index
    %115 = vector.load %arg7[%c0_58, %c160_59] : memref<2x256xf32, #tpu.memory_space<vmem>>, vector<1x32xf32>
    %116 = vector.shape_cast %115 : vector<1x32xf32> to vector<32xf32>
    %117 = vector.shape_cast %114 : vector<32xf32> to vector<1x32xf32>
    tpu.vector_store %arg7[%c0_58, %c160_59], %117 {strides = array<i32>} : memref<2x256xf32, #tpu.memory_space<vmem>>, vector<1x32xf32>,
    %c0_60 = arith.constant 0 : index
    %c6 = arith.constant 6 : index
    %118 = memref.load %arg3[%c0_60, %c6] : memref<2x8xi32, #tpu.memory_space<smem>>
    %c0_61 = arith.constant 0 : index
    %c192 = arith.constant 192 : index
    %119 = vector.load %arg2[%c0_61, %c192] : memref<2x256xf32, #tpu.memory_space<vmem>>, vector<1x32xf32>
    %120 = vector.shape_cast %119 : vector<1x32xf32> to vector<32xf32>
    %121 = arith.index_cast %118 : i32 to index
    %c0_62 = arith.constant 0 : index
    %122 = vector.load %arg4[%121, %c0_62] : memref<16x32xf32, #tpu.memory_space<vmem>>, vector<1x32xf32>
    %123 = vector.shape_cast %122 : vector<1x32xf32> to vector<32xf32>
    %124 = arith.addf %120, %123 : vector<32xf32>
    %c0_63 = arith.constant 0 : index
    %c192_64 = arith.constant 192 : index
    %125 = vector.load %arg7[%c0_63, %c192_64] : memref<2x256xf32, #tpu.memory_space<vmem>>, vector<1x32xf32>
    %126 = vector.shape_cast %125 : vector<1x32xf32> to vector<32xf32>
    %127 = vector.shape_cast %124 : vector<32xf32> to vector<1x32xf32>
    tpu.vector_store %arg7[%c0_63, %c192_64], %127 {strides = array<i32>} : memref<2x256xf32, #tpu.memory_space<vmem>>, vector<1x32xf32>,
    %c0_65 = arith.constant 0 : index
    %c7 = arith.constant 7 : index
    %128 = memref.load %arg3[%c0_65, %c7] : memref<2x8xi32, #tpu.memory_space<smem>>
    %c0_66 = arith.constant 0 : index
    %c224 = arith.constant 224 : index
    %129 = vector.load %arg2[%c0_66, %c224] : memref<2x256xf32, #tpu.memory_space<vmem>>, vector<1x32xf32>
    %130 = vector.shape_cast %129 : vector<1x32xf32> to vector<32xf32>
    %131 = arith.index_cast %128 : i32 to index
    %c0_67 = arith.constant 0 : index
    %132 = vector.load %arg4[%131, %c0_67] : memref<16x32xf32, #tpu.memory_space<vmem>>, vector<1x32xf32>
    %133 = vector.shape_cast %132 : vector<1x32xf32> to vector<32xf32>
    %134 = arith.addf %130, %133 : vector<32xf32>
    %c0_68 = arith.constant 0 : index
    %c224_69 = arith.constant 224 : index
    %135 = vector.load %arg7[%c0_68, %c224_69] : memref<2x256xf32, #tpu.memory_space<vmem>>, vector<1x32xf32>
    %136 = vector.shape_cast %135 : vector<1x32xf32> to vector<32xf32>
    %137 = vector.shape_cast %134 : vector<32xf32> to vector<1x32xf32>
    tpu.vector_store %arg7[%c0_68, %c224_69], %137 {strides = array<i32>} : memref<2x256xf32, #tpu.memory_space<vmem>>, vector<1x32xf32>,
    %c1_70 = arith.constant 1 : index
    %c0_71 = arith.constant 0 : index
    %138 = memref.load %arg3[%c1_70, %c0_71] : memref<2x8xi32, #tpu.memory_space<smem>>
    %c1_72 = arith.constant 1 : index
    %c0_73 = arith.constant 0 : index
    %139 = vector.load %arg2[%c1_72, %c0_73] : memref<2x256xf32, #tpu.memory_space<vmem>>, vector<1x32xf32>
    %140 = vector.shape_cast %139 : vector<1x32xf32> to vector<32xf32>
    %141 = arith.index_cast %138 : i32 to index
    %c0_74 = arith.constant 0 : index
    %142 = vector.load %arg4[%141, %c0_74] : memref<16x32xf32, #tpu.memory_space<vmem>>, vector<1x32xf32>
    %143 = vector.shape_cast %142 : vector<1x32xf32> to vector<32xf32>
    %144 = arith.addf %140, %143 : vector<32xf32>
    %c1_75 = arith.constant 1 : index
    %c0_76 = arith.constant 0 : index
    %145 = vector.load %arg7[%c1_75, %c0_76] : memref<2x256xf32, #tpu.memory_space<vmem>>, vector<1x32xf32>
    %146 = vector.shape_cast %145 : vector<1x32xf32> to vector<32xf32>
    %147 = vector.shape_cast %144 : vector<32xf32> to vector<1x32xf32>
    tpu.vector_store %arg7[%c1_75, %c0_76], %147 {strides = array<i32>} : memref<2x256xf32, #tpu.memory_space<vmem>>, vector<1x32xf32>,
    %c1_77 = arith.constant 1 : index
    %c1_78 = arith.constant 1 : index
    %148 = memref.load %arg3[%c1_77, %c1_78] : memref<2x8xi32, #tpu.memory_space<smem>>
    %c1_79 = arith.constant 1 : index
    %c32_80 = arith.constant 32 : index
    %149 = vector.load %arg2[%c1_79, %c32_80] : memref<2x256xf32, #tpu.memory_space<vmem>>, vector<1x32xf32>
    %150 = vector.shape_cast %149 : vector<1x32xf32> to vector<32xf32>
    %151 = arith.index_cast %148 : i32 to index
    %c0_81 = arith.constant 0 : index
    %152 = vector.load %arg4[%151, %c0_81] : memref<16x32xf32, #tpu.memory_space<vmem>>, vector<1x32xf32>
    %153 = vector.shape_cast %152 : vector<1x32xf32> to vector<32xf32>
    %154 = arith.addf %150, %153 : vector<32xf32>
    %c1_82 = arith.constant 1 : index
    %c32_83 = arith.constant 32 : index
    %155 = vector.load %arg7[%c1_82, %c32_83] : memref<2x256xf32, #tpu.memory_space<vmem>>, vector<1x32xf32>
    %156 = vector.shape_cast %155 : vector<1x32xf32> to vector<32xf32>
    %157 = vector.shape_cast %154 : vector<32xf32> to vector<1x32xf32>
    tpu.vector_store %arg7[%c1_82, %c32_83], %157 {strides = array<i32>} : memref<2x256xf32, #tpu.memory_space<vmem>>, vector<1x32xf32>,
    %c1_84 = arith.constant 1 : index
    %c2_85 = arith.constant 2 : index
    %158 = memref.load %arg3[%c1_84, %c2_85] : memref<2x8xi32, #tpu.memory_space<smem>>
    %c1_86 = arith.constant 1 : index
    %c64_87 = arith.constant 64 : index
    %159 = vector.load %arg2[%c1_86, %c64_87] : memref<2x256xf32, #tpu.memory_space<vmem>>, vector<1x32xf32>
    %160 = vector.shape_cast %159 : vector<1x32xf32> to vector<32xf32>
    %161 = arith.index_cast %158 : i32 to index
    %c0_88 = arith.constant 0 : index
    %162 = vector.load %arg4[%161, %c0_88] : memref<16x32xf32, #tpu.memory_space<vmem>>, vector<1x32xf32>
    %163 = vector.shape_cast %162 : vector<1x32xf32> to vector<32xf32>
    %164 = arith.addf %160, %163 : vector<32xf32>
    %c1_89 = arith.constant 1 : index
    %c64_90 = arith.constant 64 : index
    %165 = vector.load %arg7[%c1_89, %c64_90] : memref<2x256xf32, #tpu.memory_space<vmem>>, vector<1x32xf32>
    %166 = vector.shape_cast %165 : vector<1x32xf32> to vector<32xf32>
    %167 = vector.shape_cast %164 : vector<32xf32> to vector<1x32xf32>
    tpu.vector_store %arg7[%c1_89, %c64_90], %167 {strides = array<i32>} : memref<2x256xf32, #tpu.memory_space<vmem>>, vector<1x32xf32>,
    %c1_91 = arith.constant 1 : index
    %c3_92 = arith.constant 3 : index
    %168 = memref.load %arg3[%c1_91, %c3_92] : memref<2x8xi32, #tpu.memory_space<smem>>
    %c1_93 = arith.constant 1 : index
    %c96_94 = arith.constant 96 : index
    %169 = vector.load %arg2[%c1_93, %c96_94] : memref<2x256xf32, #tpu.memory_space<vmem>>, vector<1x32xf32>
    %170 = vector.shape_cast %169 : vector<1x32xf32> to vector<32xf32>
    %171 = arith.index_cast %168 : i32 to index
    %c0_95 = arith.constant 0 : index
    %172 = vector.load %arg4[%171, %c0_95] : memref<16x32xf32, #tpu.memory_space<vmem>>, vector<1x32xf32>
    %173 = vector.shape_cast %172 : vector<1x32xf32> to vector<32xf32>
    %174 = arith.addf %170, %173 : vector<32xf32>
    %c1_96 = arith.constant 1 : index
    %c96_97 = arith.constant 96 : index
    %175 = vector.load %arg7[%c1_96, %c96_97] : memref<2x256xf32, #tpu.memory_space<vmem>>, vector<1x32xf32>
    %176 = vector.shape_cast %175 : vector<1x32xf32> to vector<32xf32>
    %177 = vector.shape_cast %174 : vector<32xf32> to vector<1x32xf32>
    tpu.vector_store %arg7[%c1_96, %c96_97], %177 {strides = array<i32>} : memref<2x256xf32, #tpu.memory_space<vmem>>, vector<1x32xf32>,
    %c1_98 = arith.constant 1 : index
    %c4_99 = arith.constant 4 : index
    %178 = memref.load %arg3[%c1_98, %c4_99] : memref<2x8xi32, #tpu.memory_space<smem>>
    %c1_100 = arith.constant 1 : index
    %c128_101 = arith.constant 128 : index
    %179 = vector.load %arg2[%c1_100, %c128_101] : memref<2x256xf32, #tpu.memory_space<vmem>>, vector<1x32xf32>
    %180 = vector.shape_cast %179 : vector<1x32xf32> to vector<32xf32>
    %181 = arith.index_cast %178 : i32 to index
    %c0_102 = arith.constant 0 : index
    %182 = vector.load %arg4[%181, %c0_102] : memref<16x32xf32, #tpu.memory_space<vmem>>, vector<1x32xf32>
    %183 = vector.shape_cast %182 : vector<1x32xf32> to vector<32xf32>
    %184 = arith.addf %180, %183 : vector<32xf32>
    %c1_103 = arith.constant 1 : index
    %c128_104 = arith.constant 128 : index
    %185 = vector.load %arg7[%c1_103, %c128_104] : memref<2x256xf32, #tpu.memory_space<vmem>>, vector<1x32xf32>
    %186 = vector.shape_cast %185 : vector<1x32xf32> to vector<32xf32>
    %187 = vector.shape_cast %184 : vector<32xf32> to vector<1x32xf32>
    tpu.vector_store %arg7[%c1_103, %c128_104], %187 {strides = array<i32>} : memref<2x256xf32, #tpu.memory_space<vmem>>, vector<1x32xf32>,
    %c1_105 = arith.constant 1 : index
    %c5_106 = arith.constant 5 : index
    %188 = memref.load %arg3[%c1_105, %c5_106] : memref<2x8xi32, #tpu.memory_space<smem>>
    %c1_107 = arith.constant 1 : index
    %c160_108 = arith.constant 160 : index
    %189 = vector.load %arg2[%c1_107, %c160_108] : memref<2x256xf32, #tpu.memory_space<vmem>>, vector<1x32xf32>
    %190 = vector.shape_cast %189 : vector<1x32xf32> to vector<32xf32>
    %191 = arith.index_cast %188 : i32 to index
    %c0_109 = arith.constant 0 : index
    %192 = vector.load %arg4[%191, %c0_109] : memref<16x32xf32, #tpu.memory_space<vmem>>, vector<1x32xf32>
    %193 = vector.shape_cast %192 : vector<1x32xf32> to vector<32xf32>
    %194 = arith.addf %190, %193 : vector<32xf32>
    %c1_110 = arith.constant 1 : index
    %c160_111 = arith.constant 160 : index
    %195 = vector.load %arg7[%c1_110, %c160_111] : memref<2x256xf32, #tpu.memory_space<vmem>>, vector<1x32xf32>
    %196 = vector.shape_cast %195 : vector<1x32xf32> to vector<32xf32>
    %197 = vector.shape_cast %194 : vector<32xf32> to vector<1x32xf32>
    tpu.vector_store %arg7[%c1_110, %c160_111], %197 {strides = array<i32>} : memref<2x256xf32, #tpu.memory_space<vmem>>, vector<1x32xf32>,
    %c1_112 = arith.constant 1 : index
    %c6_113 = arith.constant 6 : index
    %198 = memref.load %arg3[%c1_112, %c6_113] : memref<2x8xi32, #tpu.memory_space<smem>>
    %c1_114 = arith.constant 1 : index
    %c192_115 = arith.constant 192 : index
    %199 = vector.load %arg2[%c1_114, %c192_115] : memref<2x256xf32, #tpu.memory_space<vmem>>, vector<1x32xf32>
    %200 = vector.shape_cast %199 : vector<1x32xf32> to vector<32xf32>
    %201 = arith.index_cast %198 : i32 to index
    %c0_116 = arith.constant 0 : index
    %202 = vector.load %arg4[%201, %c0_116] : memref<16x32xf32, #tpu.memory_space<vmem>>, vector<1x32xf32>
    %203 = vector.shape_cast %202 : vector<1x32xf32> to vector<32xf32>
    %204 = arith.addf %200, %203 : vector<32xf32>
    %c1_117 = arith.constant 1 : index
    %c192_118 = arith.constant 192 : index
    %205 = vector.load %arg7[%c1_117, %c192_118] : memref<2x256xf32, #tpu.memory_space<vmem>>, vector<1x32xf32>
    %206 = vector.shape_cast %205 : vector<1x32xf32> to vector<32xf32>
    %207 = vector.shape_cast %204 : vector<32xf32> to vector<1x32xf32>
    tpu.vector_store %arg7[%c1_117, %c192_118], %207 {strides = array<i32>} : memref<2x256xf32, #tpu.memory_space<vmem>>, vector<1x32xf32>,
    %c1_119 = arith.constant 1 : index
    %c7_120 = arith.constant 7 : index
    %208 = memref.load %arg3[%c1_119, %c7_120] : memref<2x8xi32, #tpu.memory_space<smem>>
    %c1_121 = arith.constant 1 : index
    %c224_122 = arith.constant 224 : index
    %209 = vector.load %arg2[%c1_121, %c224_122] : memref<2x256xf32, #tpu.memory_space<vmem>>, vector<1x32xf32>
    %210 = vector.shape_cast %209 : vector<1x32xf32> to vector<32xf32>
    %211 = arith.index_cast %208 : i32 to index
    %c0_123 = arith.constant 0 : index
    %212 = vector.load %arg4[%211, %c0_123] : memref<16x32xf32, #tpu.memory_space<vmem>>, vector<1x32xf32>
    %213 = vector.shape_cast %212 : vector<1x32xf32> to vector<32xf32>
    %214 = arith.addf %210, %213 : vector<32xf32>
    %c1_124 = arith.constant 1 : index
    %c224_125 = arith.constant 224 : index
    %215 = vector.load %arg7[%c1_124, %c224_125] : memref<2x256xf32, #tpu.memory_space<vmem>>, vector<1x32xf32>
    %216 = vector.shape_cast %215 : vector<1x32xf32> to vector<32xf32>
    %217 = vector.shape_cast %214 : vector<32xf32> to vector<1x32xf32>
    tpu.vector_store %arg7[%c1_124, %c224_125], %217 {strides = array<i32>} : memref<2x256xf32, #tpu.memory_space<vmem>>, vector<1x32xf32>,
    return
  }
}

</mosaic_0001>

<llo_original>
// kernel: rnova_decoder_forward.1
$region0: #{rnova_decoder_forward.1}
  #allocation0 [shape = 'u32[]', space=smem, size = 0x4, offset = 0x4, fixed_abs, tag = 'smem constant byte address 0x4 - core index']
  #allocation1 [shape = 'u32[144,128]{1,0:T(1,128)}', space=vmem, size = 0x12000, scoped, tag = 'internal scratch']
  %s0 = inlined_call_operand.vmem [shape: f32[2,8,1], index: 0, kind: input, shape index: {}]
  %s1 = inlined_call_operand.vmem [shape: f32[2,16,1], index: 1, kind: input, shape index: {}]
  %s2 = inlined_call_operand.vmem [shape: f32[2,256], index: 2, kind: input, shape index: {}]
  %s3 = inlined_call_operand.vmem [shape: s32[2,8], index: 3, kind: input, shape index: {}]
  %s4 = inlined_call_operand.vmem [shape: f32[16,32], index: 4, kind: input, shape index: {}]
  %s5 = inlined_call_operand.vmem [shape: f32[2,8,32], index: 5, kind: output, shape index: {0}]
  %s6 = inlined_call_operand.vmem [shape: f32[2,16,32], index: 6, kind: output, shape index: {1}]
  %s7 = inlined_call_operand.vmem [shape: f32[2,256], index: 7, kind: output, shape index: {2}]
  %8 = xla_tuple %s5, %s6, %s7
  %s9 = sld [smem:[#allocation0]]
  $region50: #{rnova_decoder_forward.1} parent=0
    _
  %s11 = ssub.s32 1, %s9
  %s12 = scalar_select 0, %s11, %s9
  $region1: #{rnova_decoder_forward.1} parent=0
    #allocation2 [shape = 'u8[1024]{0}', space=smem, size = 0x400, scoped, tag = 'input window, operand 3, single buffered']
    #allocation3 [shape = 's32[1]{0}', space=sflag, size = 0x4, scoped, tag = 'scoped memory for rnova_decoder_forward.1']
    %13 = vsyncpa [#allocation3], 0
    // Predicated region
    $region2: #{rnova_decoder_forward.1} parent=1 // pred_check
      _
    $region3: #{rnova_decoder_forward.1} parent=1 // pred_check_branch
      %15 = sbr.rel (0) target = $region5
    $region4: #{rnova_decoder_forward.1} parent=1 // pred_region
      _
    $region5: #{rnova_decoder_forward.1} parent=1 // pred_fallthru
      _
    // Predicated region
    $region6: #{rnova_decoder_forward.1} parent=1 // pred_check
      _
    $region7: #{rnova_decoder_forward.1} parent=1 // pred_check_branch
      %17 = sbr.rel (0) target = $region9
    $region8: #{rnova_decoder_forward.1} parent=1 // pred_region
      _
    $region9: #{rnova_decoder_forward.1} parent=1 // pred_fallthru
      _
    // Predicated region
    $region10: #{rnova_decoder_forward.1} parent=1 // pred_check
      _
    $region11: #{rnova_decoder_forward.1} parent=1 // pred_check_branch
      %19 = sbr.rel (0) target = $region13
    $region12: #{rnova_decoder_forward.1} parent=1 // pred_region
      _
    $region13: #{rnova_decoder_forward.1} parent=1 // pred_fallthru
      _
    // Predicated region
    $region14: #{rnova_decoder_forward.1} parent=1 // pred_check
      _
    $region15: #{rnova_decoder_forward.1} parent=1 // pred_check_branch
      %21 = sbr.rel (0) target = $region17
    $region16: #{rnova_decoder_forward.1} parent=1 // pred_region
      %s23 = ssub.s32 32, 32
      %24 = vsyncadd [#allocation3], %s23
      %s26 = sshll.u32 %s3, 4
      %s27 = int_to_ptr.vmem [resolvable:$true] %s26
      %29 = dma.vmem_to_smem %s27, 32, [#allocation2], [#allocation3]
    $region17: #{rnova_decoder_forward.1} parent=1 // pred_fallthru
      _
    // Predicated region
    $region18: #{rnova_decoder_forward.1} parent=1 // pred_check
      _
    $region19: #{rnova_decoder_forward.1} parent=1 // pred_check_branch
      %31 = sbr.rel (0) target = $region21
    $region20: #{rnova_decoder_forward.1} parent=1 // pred_region
      _
    $region21: #{rnova_decoder_forward.1} parent=1 // pred_fallthru
      _
    // Predicated region
    $region22: #{rnova_decoder_forward.1} parent=1 // pred_check
      _
    $region23: #{rnova_decoder_forward.1} parent=1 // pred_check_branch
      %33 = sbr.rel (0) target = $region25
    $region24: #{rnova_decoder_forward.1} parent=1 // pred_region
      %34 = dma.done [#allocation3], 32
    $region25: #{rnova_decoder_forward.1} parent=1 // pred_fallthru
      _
    %35 = sfence
    %v36 = vld [vmem:[%s0] sm:$0xff]
    %v37 = vld [vmem:[%s0 + $0x8] sm:$0xff]
    %v38 = vlaneseq
    %v39 = vand.u32 %v38, 127
    %v40 = vand.u32 %v39, 7
    %v41 = vand.u32 %v40, 3
    %vm42 = vcmp.eq.s32.totalorder %v41, 0
    %v43 = vsel %vm42, 0.0006283185, 628.31854
    %vm44 = vcmp.eq.s32.totalorder %v41, 1
    %v45 = vsel %vm44, 0.06283186, %v43
    %vm46 = vcmp.eq.s32.totalorder %v41, 2
    %v47 = vsel %vm46, 6.2831855, %v45
    %vm48 = vcmp.ge.s32.totalorder %v40, 4
    %v49 = vsel %vm48, 1.5707964, 0.0
    %51 = vset.pattern.permute.xlu0 0
    %52 = vperm.xlu0 %51, %v36
    %v53 = vpop.permute.xlu0 %52
    %56 = vset.pattern.permute.xlu0 0
    %57 = vperm.xlu0 %56, %v37
    %v58 = vpop.permute.xlu0 %57
    %v60 = vmul.f32 %v53, %v47
    %v61 = vmul.f32 %v58, %v47
    %v62 = vadd.f32 %v60, %v49
    %v63 = vadd.f32 %v61, %v49
    %v64 = vand.u32 2147483647, %v62
    %vm65 = vcmp.le.f32.partialorder %v64, 0.7853982
    %vm66 = vcmp.lt.s32.totalorder %v62, 0
    %v67 = vand.u32 %v62, 2139095040
    %v68 = vshrl.u32 %v67, 23
    %v69 = vsub.s32 %v68, 127
    %v70 = vand.u32 2147483647, %v62
    %v71 = vand.u32 %v70, 8388607
    %v72 = vor.u32 %v71, 8388608
    %v73 = vsub.s32 0, %v72
    %v74 = vadd.s32 %v69, 1
    %vm75 = vcmp.gt.s32.totalorder %v74, 0
    %v76 = vsel %vm75, %v74, 0
    %v77 = vshrl.u32 %v76, 5
    %v78 = vand.u32 %v76, 31
    %v79 = vsub.s32 32, %v78
    %v80 = vshrl.u32 683565275, %v79
    %v81 = vshll.u32 683565275, %v78
    %v82 = vshrl.u32 2475754826, %v79
    %v83 = vor.u32 %v81, %v82
    %v84 = vshll.u32 2475754826, %v78
    %v85 = vshrl.u32 2131351028, %v79
    %v86 = vor.u32 %v84, %v85
    %v87 = vshll.u32 2131351028, %v78
    %v88 = vshrl.u32 2102212464, %v79
    %v89 = vor.u32 %v87, %v88
    %v90 = vshll.u32 2102212464, %v78
    %v91 = vshrl.u32 920167782, %v79
    %v92 = vor.u32 %v90, %v91
    %v93 = vshll.u32 920167782, %v78
    %v94 = vshrl.u32 1326507024, %v79
    %v95 = vor.u32 %v93, %v94
    %vm96 = vcmp.lt.s32.totalorder %v77, 1
    %vm97 = vcmp.lt.s32.totalorder %v77, 2
    %vm98 = vcmp.lt.s32.totalorder %v77, 3
    %vm99 = vcmp.lt.s32.totalorder %v77, 4
    %v100 = vsel %vm96, %v80, %v83
    %v101 = vsel %vm99, %v89, 2102212464
    %v102 = vsel %vm98, %v86, %v101
    %v103 = vsel %vm97, %v100, %v102
    %v104 = vsel %vm96, %v83, %v86
    %v105 = vsel %vm99, %v92, 920167782
    %v106 = vsel %vm98, %v89, %v105
    %v107 = vsel %vm97, %v104, %v106
    %v108 = vsel %vm96, %v86, %v89
    %v109 = vsel %vm99, %v95, 1326507024
    %v110 = vsel %vm98, %v92, %v109
    %v111 = vsel %vm97, %v108, %v110
    %v112 = vshll.u32 %v72, 8
    %v113 = vmul.u32.u64.compose %v112, %v111
    %v114 = vextract.low.u32 %v113
    %v115 = vextract.high.u32 %v113
    %v116 = vmul.u32.u64.compose %v112, %v107
    %v117 = vextract.low.u32 %v116
    %v118 = vextract.high.u32 %v116
    %v119 = vmul.u32 %v112, %v103
    %v120 = vadd.s32 %v115, %v117
    %vm121 = vc.u32 %v115, %v117
    %v122 = vadd.s32 %v118, 1
    %v123 = vsel %vm121, %v122, %v118
    %v124 = vadd.s32 %v119, %v123
    %v125 = vadd.s32 %v124, 536870912
    %v126 = vshrl.u32 %v125, 30
    %v127 = vshll.u32 %v126, 30
    %v128 = vsub.s32 %v124, %v127
    %vm129 = vcmp.lt.s32.totalorder %v128, 0
    %v130 = vsub.s32 0, %v128
    %v131 = vsel %vm129, %v130, %v128
    %v132 = vclz %v131
    %v133 = vsub.s32 %v132, 2
    %vm134 = vcmp.gt.s32.totalorder 0, %v133
    %v135 = vsel %vm134, 0, %v133
    %v136 = vsub.s32 32, %v135
    %v137 = vshll.u32 %v128, %v135
    %v138 = vshrl.u32 %v120, %v136
    %v139 = vor.u32 %v137, %v138
    %v140 = vsub.s32 4294967266, %v135
    %v141 = vadd.s32 %v140, 127
    %v142 = vshll.u32 %v141, 23
    %v143 = vor.u32 4788187, %v142
    %v144 = vand.u32 2147483647, %v143
    %v146 = vcvt.s32.f32 %v139
    %v147 = vmul.f32 %v146, %v144
    %v148 = vxor.u32 %v147, 2147483648
    %v149 = vsel %vm66, %v148, %v147
    %v150 = vsub.s32 4, %v126
    %v151 = vsel %vm66, %v150, %v126
    %v152 = vsel %vm65, %v62, %v149
    %v153 = vsel %vm65, 0, %v151
    %v154 = vcosq.f32.pop %v152
    %v155 = vsinq.f32.pop %v152
    %vm156 = vweird.f32 %v62
    %v157 = vadd.s32 %v153, 3
    %v158 = vand.u32 %v157, 3
    %vm159 = vcmp.lt.s32.totalorder %v158, 2
    %vm160 = vcmp.eq.s32.totalorder %v158, 0
    %v161 = vxor.u32 %v155, 2147483648
    %v162 = vsel %vm160, %v154, %v161
    %vm163 = vcmp.eq.s32.totalorder %v158, 2
    %v164 = vxor.u32 %v154, 2147483648
    %v165 = vsel %vm163, %v164, %v155
    %v166 = vsel %vm159, %v162, %v165
    %v167 = vsel %vm156, nan, %v166
    %v168 = vand.u32 2147483647, %v63
    %vm169 = vcmp.le.f32.partialorder %v168, 0.7853982
    %vm170 = vcmp.lt.s32.totalorder %v63, 0
    %v171 = vand.u32 %v63, 2139095040
    %v172 = vshrl.u32 %v171, 23
    %v173 = vsub.s32 %v172, 127
    %v174 = vand.u32 2147483647, %v63
    %v175 = vand.u32 %v174, 8388607
    %v176 = vor.u32 %v175, 8388608
    %v177 = vsub.s32 0, %v176
    %v178 = vadd.s32 %v173, 1
    %vm179 = vcmp.gt.s32.totalorder %v178, 0
    %v180 = vsel %vm179, %v178, 0
    %v181 = vshrl.u32 %v180, 5
    %v182 = vand.u32 %v180, 31
    %v183 = vsub.s32 32, %v182
    %v184 = vshrl.u32 683565275, %v183
    %v185 = vshll.u32 683565275, %v182
    %v186 = vshrl.u32 2475754826, %v183
    %v187 = vor.u32 %v185, %v186
    %v188 = vshll.u32 2475754826, %v182
    %v189 = vshrl.u32 2131351028, %v183
    %v190 = vor.u32 %v188, %v189
    %v191 = vshll.u32 2131351028, %v182
    %v192 = vshrl.u32 2102212464, %v183
    %v193 = vor.u32 %v191, %v192
    %v194 = vshll.u32 2102212464, %v182
    %v195 = vshrl.u32 920167782, %v183
    %v196 = vor.u32 %v194, %v195
    %v197 = vshll.u32 920167782, %v182
    %v198 = vshrl.u32 1326507024, %v183
    %v199 = vor.u32 %v197, %v198
    %vm200 = vcmp.lt.s32.totalorder %v181, 1
    %vm201 = vcmp.lt.s32.totalorder %v181, 2
    %vm202 = vcmp.lt.s32.totalorder %v181, 3
    %vm203 = vcmp.lt.s32.totalorder %v181, 4
    %v204 = vsel %vm200, %v184, %v187
    %v205 = vsel %vm203, %v193, 2102212464
    %v206 = vsel %vm202, %v190, %v205
    %v207 = vsel %vm201, %v204, %v206
    %v208 = vsel %vm200, %v187, %v190
    %v209 = vsel %vm203, %v196, 920167782
    %v210 = vsel %vm202, %v193, %v209
    %v211 = vsel %vm201, %v208, %v210
    %v212 = vsel %vm200, %v190, %v193
    %v213 = vsel %vm203, %v199, 1326507024
    %v214 = vsel %vm202, %v196, %v213
    %v215 = vsel %vm201, %v212, %v214
    %v216 = vshll.u32 %v176, 8
    %v217 = vmul.u32.u64.compose %v216, %v215
    %v218 = vextract.low.u32 %v217
    %v219 = vextract.high.u32 %v217
    %v220 = vmul.u32.u64.compose %v216, %v211
    %v221 = vextract.low.u32 %v220
    %v222 = vextract.high.u32 %v220
    %v223 = vmul.u32 %v216, %v207
    %v224 = vadd.s32 %v219, %v221
    %vm225 = vc.u32 %v219, %v221
    %v226 = vadd.s32 %v222, 1
    %v227 = vsel %vm225, %v226, %v222
    %v228 = vadd.s32 %v223, %v227
    %v229 = vadd.s32 %v228, 536870912
    %v230 = vshrl.u32 %v229, 30
    %v231 = vshll.u32 %v230, 30
    %v232 = vsub.s32 %v228, %v231
    %vm233 = vcmp.lt.s32.totalorder %v232, 0
    %v234 = vsub.s32 0, %v232
    %v235 = vsel %vm233, %v234, %v232
    %v236 = vclz %v235
    %v237 = vsub.s32 %v236, 2
    %vm238 = vcmp.gt.s32.totalorder 0, %v237
    %v239 = vsel %vm238, 0, %v237
    %v240 = vsub.s32 32, %v239
    %v241 = vshll.u32 %v232, %v239
    %v242 = vshrl.u32 %v224, %v240
    %v243 = vor.u32 %v241, %v242
    %v244 = vsub.s32 4294967266, %v239
    %v245 = vadd.s32 %v244, 127
    %v246 = vshll.u32 %v245, 23
    %v247 = vor.u32 4788187, %v246
    %v248 = vand.u32 2147483647, %v247
    %v250 = vcvt.s32.f32 %v243
    %v251 = vmul.f32 %v250, %v248
    %v252 = vxor.u32 %v251, 2147483648
    %v253 = vsel %vm170, %v252, %v251
    %v254 = vsub.s32 4, %v230
    %v255 = vsel %vm170, %v254, %v230
    %v256 = vsel %vm169, %v63, %v253
    %v257 = vsel %vm169, 0, %v255
    %v258 = vcosq.f32.pop %v256
    %v259 = vsinq.f32.pop %v256
    %vm260 = vweird.f32 %v63
    %v261 = vadd.s32 %v257, 3
    %v262 = vand.u32 %v261, 3
    %vm263 = vcmp.lt.s32.totalorder %v262, 2
    %vm264 = vcmp.eq.s32.totalorder %v262, 0
    %v265 = vxor.u32 %v259, 2147483648
    %v266 = vsel %vm264, %v258, %v265
    %vm267 = vcmp.eq.s32.totalorder %v262, 2
    %v268 = vxor.u32 %v258, 2147483648
    %v269 = vsel %vm267, %v268, %v259
    %v270 = vsel %vm263, %v266, %v269
    %v271 = vsel %vm260, nan, %v270
    %vm272 = vcmask 261120
    %273 = vst.msk [vmem:[%s5] sm:$0xff] %vm272, %v167
    %274 = vst.msk [vmem:[%s5 + $0x8] sm:$0xff] %vm272, %v271
    %v275 = vld [vmem:[%s1] sm:$0xff]
    %v276 = vld [vmem:[%s1 + $0x8] sm:$0xff]
    %v277 = vld [vmem:[%s1 + $0x10] sm:$0xff]
    %v278 = vld [vmem:[%s1 + $0x18] sm:$0xff]
    %280 = vset.pattern.permute.xlu0 0
    %281 = vperm.xlu0 %280, %v275
    %v282 = vpop.permute.xlu0 %281
    %285 = vset.pattern.permute.xlu0 0
    %286 = vperm.xlu0 %285, %v276
    %v287 = vpop.permute.xlu0 %286
    %290 = vset.pattern.permute.xlu0 0
    %291 = vperm.xlu0 %290, %v277
    %v292 = vpop.permute.xlu0 %291
    %295 = vset.pattern.permute.xlu0 0
    %296 = vperm.xlu0 %295, %v278
    %v297 = vpop.permute.xlu0 %296
    %v299 = vmul.f32 %v282, %v47
    %v300 = vmul.f32 %v287, %v47
    %v301 = vmul.f32 %v292, %v47
    %v302 = vmul.f32 %v297, %v47
    %v303 = vadd.f32 %v299, %v49
    %v304 = vadd.f32 %v300, %v49
    %v305 = vadd.f32 %v301, %v49
    %v306 = vadd.f32 %v302, %v49
    %v307 = vand.u32 2147483647, %v303
    %vm308 = vcmp.le.f32.partialorder %v307, 0.7853982
    %vm309 = vcmp.lt.s32.totalorder %v303, 0
    %v310 = vand.u32 %v303, 2139095040
    %v311 = vshrl.u32 %v310, 23
    %v312 = vsub.s32 %v311, 127
    %v313 = vand.u32 2147483647, %v303
    %v314 = vand.u32 %v313, 8388607
    %v315 = vor.u32 %v314, 8388608
    %v316 = vsub.s32 0, %v315
    %v317 = vadd.s32 %v312, 1
    %vm318 = vcmp.gt.s32.totalorder %v317, 0
    %v319 = vsel %vm318, %v317, 0
    %v320 = vshrl.u32 %v319, 5
    %v321 = vand.u32 %v319, 31
    %v322 = vsub.s32 32, %v321
    %v323 = vshrl.u32 683565275, %v322
    %v324 = vshll.u32 683565275, %v321
    %v325 = vshrl.u32 2475754826, %v322
    %v326 = vor.u32 %v324, %v325
    %v327 = vshll.u32 2475754826, %v321
    %v328 = vshrl.u32 2131351028, %v322
    %v329 = vor.u32 %v327, %v328
    %v330 = vshll.u32 2131351028, %v321
    %v331 = vshrl.u32 2102212464, %v322
    %v332 = vor.u32 %v330, %v331
    %v333 = vshll.u32 2102212464, %v321
    %v334 = vshrl.u32 920167782, %v322
    %v335 = vor.u32 %v333, %v334
    %v336 = vshll.u32 920167782, %v321
    %v337 = vshrl.u32 1326507024, %v322
    %v338 = vor.u32 %v336, %v337
    %vm339 = vcmp.lt.s32.totalorder %v320, 1
    %vm340 = vcmp.lt.s32.totalorder %v320, 2
    %vm341 = vcmp.lt.s32.totalorder %v320, 3
    %vm342 = vcmp.lt.s32.totalorder %v320, 4
    %v343 = vsel %vm339, %v323, %v326
    %v344 = vsel %vm342, %v332, 2102212464
    %v345 = vsel %vm341, %v329, %v344
    %v346 = vsel %vm340, %v343, %v345
    %v347 = vsel %vm339, %v326, %v329
    %v348 = vsel %vm342, %v335, 920167782
    %v349 = vsel %vm341, %v332, %v348
    %v350 = vsel %vm340, %v347, %v349
    %v351 = vsel %vm339, %v329, %v332
    %v352 = vsel %vm342, %v338, 1326507024
    %v353 = vsel %vm341, %v335, %v352
    %v354 = vsel %vm340, %v351, %v353
    %v355 = vshll.u32 %v315, 8
    %v356 = vmul.u32.u64.compose %v355, %v354
    %v357 = vextract.low.u32 %v356
    %v358 = vextract.high.u32 %v356
    %v359 = vmul.u32.u64.compose %v355, %v350
    %v360 = vextract.low.u32 %v359
    %v361 = vextract.high.u32 %v359
    %v362 = vmul.u32 %v355, %v346
    %v363 = vadd.s32 %v358, %v360
    %vm364 = vc.u32 %v358, %v360
    %v365 = vadd.s32 %v361, 1
    %v366 = vsel %vm364, %v365, %v361
    %v367 = vadd.s32 %v362, %v366
    %v368 = vadd.s32 %v367, 536870912
    %v369 = vshrl.u32 %v368, 30
    %v370 = vshll.u32 %v369, 30
    %v371 = vsub.s32 %v367, %v370
    %vm372 = vcmp.lt.s32.totalorder %v371, 0
    %v373 = vsub.s32 0, %v371
    %v374 = vsel %vm372, %v373, %v371
    %v375 = vclz %v374
    %v376 = vsub.s32 %v375, 2
    %vm377 = vcmp.gt.s32.totalorder 0, %v376
    %v378 = vsel %vm377, 0, %v376
    %v379 = vsub.s32 32, %v378
    %v380 = vshll.u32 %v371, %v378
    %v381 = vshrl.u32 %v363, %v379
    %v382 = vor.u32 %v380, %v381
    %v383 = vsub.s32 4294967266, %v378
    %v384 = vadd.s32 %v383, 127
    %v385 = vshll.u32 %v384, 23
    %v386 = vor.u32 4788187, %v385
    %v387 = vand.u32 2147483647, %v386
    %v389 = vcvt.s32.f32 %v382
    %v390 = vmul.f32 %v389, %v387
    %v391 = vxor.u32 %v390, 2147483648
    %v392 = vsel %vm309, %v391, %v390
    %v393 = vsub.s32 4, %v369
    %v394 = vsel %vm309, %v393, %v369
    %v395 = vsel %vm308, %v303, %v392
    %v396 = vsel %vm308, 0, %v394
    %v397 = vcosq.f32.pop %v395
    %v398 = vsinq.f32.pop %v395
    %vm399 = vweird.f32 %v303
    %v400 = vadd.s32 %v396, 3
    %v401 = vand.u32 %v400, 3
    %vm402 = vcmp.lt.s32.totalorder %v401, 2
    %vm403 = vcmp.eq.s32.totalorder %v401, 0
    %v404 = vxor.u32 %v398, 2147483648
    %v405 = vsel %vm403, %v397, %v404
    %vm406 = vcmp.eq.s32.totalorder %v401, 2
    %v407 = vxor.u32 %v397, 2147483648
    %v408 = vsel %vm406, %v407, %v398
    %v409 = vsel %vm402, %v405, %v408
    %v410 = vsel %vm399, nan, %v409
    %v411 = vand.u32 2147483647, %v304
    %vm412 = vcmp.le.f32.partialorder %v411, 0.7853982
    %vm413 = vcmp.lt.s32.totalorder %v304, 0
    %v414 = vand.u32 %v304, 2139095040
    %v415 = vshrl.u32 %v414, 23
    %v416 = vsub.s32 %v415, 127
    %v417 = vand.u32 2147483647, %v304
    %v418 = vand.u32 %v417, 8388607
    %v419 = vor.u32 %v418, 8388608
    %v420 = vsub.s32 0, %v419
    %v421 = vadd.s32 %v416, 1
    %vm422 = vcmp.gt.s32.totalorder %v421, 0
    %v423 = vsel %vm422, %v421, 0
    %v424 = vshrl.u32 %v423, 5
    %v425 = vand.u32 %v423, 31
    %v426 = vsub.s32 32, %v425
    %v427 = vshrl.u32 683565275, %v426
    %v428 = vshll.u32 683565275, %v425
    %v429 = vshrl.u32 2475754826, %v426
    %v430 = vor.u32 %v428, %v429
    %v431 = vshll.u32 2475754826, %v425
    %v432 = vshrl.u32 2131351028, %v426
    %v433 = vor.u32 %v431, %v432
    %v434 = vshll.u32 2131351028, %v425
    %v435 = vshrl.u32 2102212464, %v426
    %v436 = vor.u32 %v434, %v435
    %v437 = vshll.u32 2102212464, %v425
    %v438 = vshrl.u32 920167782, %v426
    %v439 = vor.u32 %v437, %v438
    %v440 = vshll.u32 920167782, %v425
    %v441 = vshrl.u32 1326507024, %v426
    %v442 = vor.u32 %v440, %v441
    %vm443 = vcmp.lt.s32.totalorder %v424, 1
    %vm444 = vcmp.lt.s32.totalorder %v424, 2
    %vm445 = vcmp.lt.s32.totalorder %v424, 3
    %vm446 = vcmp.lt.s32.totalorder %v424, 4
    %v447 = vsel %vm443, %v427, %v430
    %v448 = vsel %vm446, %v436, 2102212464
    %v449 = vsel %vm445, %v433, %v448
    %v450 = vsel %vm444, %v447, %v449
    %v451 = vsel %vm443, %v430, %v433
    %v452 = vsel %vm446, %v439, 920167782
    %v453 = vsel %vm445, %v436, %v452
    %v454 = vsel %vm444, %v451, %v453
    %v455 = vsel %vm443, %v433, %v436
    %v456 = vsel %vm446, %v442, 1326507024
    %v457 = vsel %vm445, %v439, %v456
    %v458 = vsel %vm444, %v455, %v457
    %v459 = vshll.u32 %v419, 8
    %v460 = vmul.u32.u64.compose %v459, %v458
    %v461 = vextract.low.u32 %v460
    %v462 = vextract.high.u32 %v460
    %v463 = vmul.u32.u64.compose %v459, %v454
    %v464 = vextract.low.u32 %v463
    %v465 = vextract.high.u32 %v463
    %v466 = vmul.u32 %v459, %v450
    %v467 = vadd.s32 %v462, %v464
    %vm468 = vc.u32 %v462, %v464
    %v469 = vadd.s32 %v465, 1
    %v470 = vsel %vm468, %v469, %v465
    %v471 = vadd.s32 %v466, %v470
    %v472 = vadd.s32 %v471, 536870912
    %v473 = vshrl.u32 %v472, 30
    %v474 = vshll.u32 %v473, 30
    %v475 = vsub.s32 %v471, %v474
    %vm476 = vcmp.lt.s32.totalorder %v475, 0
    %v477 = vsub.s32 0, %v475
    %v478 = vsel %vm476, %v477, %v475
    %v479 = vclz %v478
    %v480 = vsub.s32 %v479, 2
    %vm481 = vcmp.gt.s32.totalorder 0, %v480
    %v482 = vsel %vm481, 0, %v480
    %v483 = vsub.s32 32, %v482
    %v484 = vshll.u32 %v475, %v482
    %v485 = vshrl.u32 %v467, %v483
    %v486 = vor.u32 %v484, %v485
    %v487 = vsub.s32 4294967266, %v482
    %v488 = vadd.s32 %v487, 127
    %v489 = vshll.u32 %v488, 23
    %v490 = vor.u32 4788187, %v489
    %v491 = vand.u32 2147483647, %v490
    %v493 = vcvt.s32.f32 %v486
    %v494 = vmul.f32 %v493, %v491
    %v495 = vxor.u32 %v494, 2147483648
    %v496 = vsel %vm413, %v495, %v494
    %v497 = vsub.s32 4, %v473
    %v498 = vsel %vm413, %v497, %v473
    %v499 = vsel %vm412, %v304, %v496
    %v500 = vsel %vm412, 0, %v498
    %v501 = vcosq.f32.pop %v499
    %v502 = vsinq.f32.pop %v499
    %vm503 = vweird.f32 %v304
    %v504 = vadd.s32 %v500, 3
    %v505 = vand.u32 %v504, 3
    %vm506 = vcmp.lt.s32.totalorder %v505, 2
    %vm507 = vcmp.eq.s32.totalorder %v505, 0
    %v508 = vxor.u32 %v502, 2147483648
    %v509 = vsel %vm507, %v501, %v508
    %vm510 = vcmp.eq.s32.totalorder %v505, 2
    %v511 = vxor.u32 %v501, 2147483648
    %v512 = vsel %vm510, %v511, %v502
    %v513 = vsel %vm506, %v509, %v512
    %v514 = vsel %vm503, nan, %v513
    %v515 = vand.u32 2147483647, %v305
    %vm516 = vcmp.le.f32.partialorder %v515, 0.7853982
    %vm517 = vcmp.lt.s32.totalorder %v305, 0
    %v518 = vand.u32 %v305, 2139095040
    %v519 = vshrl.u32 %v518, 23
    %v520 = vsub.s32 %v519, 127
    %v521 = vand.u32 2147483647, %v305
    %v522 = vand.u32 %v521, 8388607
    %v523 = vor.u32 %v522, 8388608
    %v524 = vsub.s32 0, %v523
    %v525 = vadd.s32 %v520, 1
    %vm526 = vcmp.gt.s32.totalorder %v525, 0
    %v527 = vsel %vm526, %v525, 0
    %v528 = vshrl.u32 %v527, 5
    %v529 = vand.u32 %v527, 31
    %v530 = vsub.s32 32, %v529
    %v531 = vshrl.u32 683565275, %v530
    %v532 = vshll.u32 683565275, %v529
    %v533 = vshrl.u32 2475754826, %v530
    %v534 = vor.u32 %v532, %v533
    %v535 = vshll.u32 2475754826, %v529
    %v536 = vshrl.u32 2131351028, %v530
    %v537 = vor.u32 %v535, %v536
    %v538 = vshll.u32 2131351028, %v529
    %v539 = vshrl.u32 2102212464, %v530
    %v540 = vor.u32 %v538, %v539
    %v541 = vshll.u32 2102212464, %v529
    %v542 = vshrl.u32 920167782, %v530
    %v543 = vor.u32 %v541, %v542
    %v544 = vshll.u32 920167782, %v529
    %v545 = vshrl.u32 1326507024, %v530
    %v546 = vor.u32 %v544, %v545
    %vm547 = vcmp.lt.s32.totalorder %v528, 1
    %vm548 = vcmp.lt.s32.totalorder %v528, 2
    %vm549 = vcmp.lt.s32.totalorder %v528, 3
    %vm550 = vcmp.lt.s32.totalorder %v528, 4
    %v551 = vsel %vm547, %v531, %v534
    %v552 = vsel %vm550, %v540, 2102212464
    %v553 = vsel %vm549, %v537, %v552
    %v554 = vsel %vm548, %v551, %v553
    %v555 = vsel %vm547, %v534, %v537
    %v556 = vsel %vm550, %v543, 920167782
    %v557 = vsel %vm549, %v540, %v556
    %v558 = vsel %vm548, %v555, %v557
    %v559 = vsel %vm547, %v537, %v540
    %v560 = vsel %vm550, %v546, 1326507024
    %v561 = vsel %vm549, %v543, %v560
    %v562 = vsel %vm548, %v559, %v561
    %v563 = vshll.u32 %v523, 8
    %v564 = vmul.u32.u64.compose %v563, %v562
    %v565 = vextract.low.u32 %v564
    %v566 = vextract.high.u32 %v564
    %v567 = vmul.u32.u64.compose %v563, %v558
    %v568 = vextract.low.u32 %v567
    %v569 = vextract.high.u32 %v567
    %v570 = vmul.u32 %v563, %v554
    %v571 = vadd.s32 %v566, %v568
    %vm572 = vc.u32 %v566, %v568
    %v573 = vadd.s32 %v569, 1
    %v574 = vsel %vm572, %v573, %v569
    %v575 = vadd.s32 %v570, %v574
    %v576 = vadd.s32 %v575, 536870912
    %v577 = vshrl.u32 %v576, 30
    %v578 = vshll.u32 %v577, 30
    %v579 = vsub.s32 %v575, %v578
    %vm580 = vcmp.lt.s32.totalorder %v579, 0
    %v581 = vsub.s32 0, %v579
    %v582 = vsel %vm580, %v581, %v579
    %v583 = vclz %v582
    %v584 = vsub.s32 %v583, 2
    %vm585 = vcmp.gt.s32.totalorder 0, %v584
    %v586 = vsel %vm585, 0, %v584
    %v587 = vsub.s32 32, %v586
    %v588 = vshll.u32 %v579, %v586
    %v589 = vshrl.u32 %v571, %v587
    %v590 = vor.u32 %v588, %v589
    %v591 = vsub.s32 4294967266, %v586
    %v592 = vadd.s32 %v591, 127
    %v593 = vshll.u32 %v592, 23
    %v594 = vor.u32 4788187, %v593
    %v595 = vand.u32 2147483647, %v594
    %v597 = vcvt.s32.f32 %v590
    %v598 = vmul.f32 %v597, %v595
    %v599 = vxor.u32 %v598, 2147483648
    %v600 = vsel %vm517, %v599, %v598
    %v601 = vsub.s32 4, %v577
    %v602 = vsel %vm517, %v601, %v577
    %v603 = vsel %vm516, %v305, %v600
    %v604 = vsel %vm516, 0, %v602
    %v605 = vcosq.f32.pop %v603
    %v606 = vsinq.f32.pop %v603
    %vm607 = vweird.f32 %v305
    %v608 = vadd.s32 %v604, 3
    %v609 = vand.u32 %v608, 3
    %vm610 = vcmp.lt.s32.totalorder %v609, 2
    %vm611 = vcmp.eq.s32.totalorder %v609, 0
    %v612 = vxor.u32 %v606, 2147483648
    %v613 = vsel %vm611, %v605, %v612
    %vm614 = vcmp.eq.s32.totalorder %v609, 2
    %v615 = vxor.u32 %v605, 2147483648
    %v616 = vsel %vm614, %v615, %v606
    %v617 = vsel %vm610, %v613, %v616
    %v618 = vsel %vm607, nan, %v617
    %v619 = vand.u32 2147483647, %v306
    %vm620 = vcmp.le.f32.partialorder %v619, 0.7853982
    %vm621 = vcmp.lt.s32.totalorder %v306, 0
    %v622 = vand.u32 %v306, 2139095040
    %v623 = vshrl.u32 %v622, 23
    %v624 = vsub.s32 %v623, 127
    %v625 = vand.u32 2147483647, %v306
    %v626 = vand.u32 %v625, 8388607
    %v627 = vor.u32 %v626, 8388608
    %v628 = vsub.s32 0, %v627
    %v629 = vadd.s32 %v624, 1
    %vm630 = vcmp.gt.s32.totalorder %v629, 0
    %v631 = vsel %vm630, %v629, 0
    %v632 = vshrl.u32 %v631, 5
    %v633 = vand.u32 %v631, 31
    %v634 = vsub.s32 32, %v633
    %v635 = vshrl.u32 683565275, %v634
    %v636 = vshll.u32 683565275, %v633
    %v637 = vshrl.u32 2475754826, %v634
    %v638 = vor.u32 %v636, %v637
    %v639 = vshll.u32 2475754826, %v633
    %v640 = vshrl.u32 2131351028, %v634
    %v641 = vor.u32 %v639, %v640
    %v642 = vshll.u32 2131351028, %v633
    %v643 = vshrl.u32 2102212464, %v634
    %v644 = vor.u32 %v642, %v643
    %v645 = vshll.u32 2102212464, %v633
    %v646 = vshrl.u32 920167782, %v634
    %v647 = vor.u32 %v645, %v646
    %v648 = vshll.u32 920167782, %v633
    %v649 = vshrl.u32 1326507024, %v634
    %v650 = vor.u32 %v648, %v649
    %vm651 = vcmp.lt.s32.totalorder %v632, 1
    %vm652 = vcmp.lt.s32.totalorder %v632, 2
    %vm653 = vcmp.lt.s32.totalorder %v632, 3
    %vm654 = vcmp.lt.s32.totalorder %v632, 4
    %v655 = vsel %vm651, %v635, %v638
    %v656 = vsel %vm654, %v644, 2102212464
    %v657 = vsel %vm653, %v641, %v656
    %v658 = vsel %vm652, %v655, %v657
    %v659 = vsel %vm651, %v638, %v641
    %v660 = vsel %vm654, %v647, 920167782
    %v661 = vsel %vm653, %v644, %v660
    %v662 = vsel %vm652, %v659, %v661
    %v663 = vsel %vm651, %v641, %v644
    %v664 = vsel %vm654, %v650, 1326507024
    %v665 = vsel %vm653, %v647, %v664
    %v666 = vsel %vm652, %v663, %v665
    %v667 = vshll.u32 %v627, 8
    %v668 = vmul.u32.u64.compose %v667, %v666
    %v669 = vextract.low.u32 %v668
    %v670 = vextract.high.u32 %v668
    %v671 = vmul.u32.u64.compose %v667, %v662
    %v672 = vextract.low.u32 %v671
    %v673 = vextract.high.u32 %v671
    %v674 = vmul.u32 %v667, %v658
    %v675 = vadd.s32 %v670, %v672
    %vm676 = vc.u32 %v670, %v672
    %v677 = vadd.s32 %v673, 1
    %v678 = vsel %vm676, %v677, %v673
    %v679 = vadd.s32 %v674, %v678
    %v680 = vadd.s32 %v679, 536870912
    %v681 = vshrl.u32 %v680, 30
    %v682 = vshll.u32 %v681, 30
    %v683 = vsub.s32 %v679, %v682
    %vm684 = vcmp.lt.s32.totalorder %v683, 0
    %v685 = vsub.s32 0, %v683
    %v686 = vsel %vm684, %v685, %v683
    %v687 = vclz %v686
    %v688 = vsub.s32 %v687, 2
    %vm689 = vcmp.gt.s32.totalorder 0, %v688
    %v690 = vsel %vm689, 0, %v688
    %v691 = vsub.s32 32, %v690
    %v692 = vshll.u32 %v683, %v690
    %v693 = vshrl.u32 %v675, %v691
    %v694 = vor.u32 %v692, %v693
    %v695 = vsub.s32 4294967266, %v690
    %v696 = vadd.s32 %v695, 127
    %v697 = vshll.u32 %v696, 23
    %v698 = vor.u32 4788187, %v697
    %v699 = vand.u32 2147483647, %v698
    %v701 = vcvt.s32.f32 %v694
    %v702 = vmul.f32 %v701, %v699
    %v703 = vxor.u32 %v702, 2147483648
    %v704 = vsel %vm621, %v703, %v702
    %v705 = vsub.s32 4, %v681
    %v706 = vsel %vm621, %v705, %v681
    %v707 = vsel %vm620, %v306, %v704
    %v708 = vsel %vm620, 0, %v706
    %v709 = vcosq.f32.pop %v707
    %v710 = vsinq.f32.pop %v707
    %vm711 = vweird.f32 %v306
    %v712 = vadd.s32 %v708, 3
    %v713 = vand.u32 %v712, 3
    %vm714 = vcmp.lt.s32.totalorder %v713, 2
    %vm715 = vcmp.eq.s32.totalorder %v713, 0
    %v716 = vxor.u32 %v710, 2147483648
    %v717 = vsel %vm715, %v709, %v716
    %vm718 = vcmp.eq.s32.totalorder %v713, 2
    %v719 = vxor.u32 %v709, 2147483648
    %v720 = vsel %vm718, %v719, %v710
    %v721 = vsel %vm714, %v717, %v720
    %v722 = vsel %vm711, nan, %v721
    %723 = vst.msk [vmem:[%s6] sm:$0xff] %vm272, %v410
    %724 = vst.msk [vmem:[%s6 + $0x8] sm:$0xff] %vm272, %v514
    %725 = vst.msk [vmem:[%s6 + $0x10] sm:$0xff] %vm272, %v618
    %726 = vst.msk [vmem:[%s6 + $0x18] sm:$0xff] %vm272, %v722
    %s727 = sld [smem:[#allocation2]]
    %v728 = vld [vmem:[%s2] sm:$0x1]
    %s729 = scalar_lea.vmem %s4, %s727
    %v730 = vld [vmem:[%s729] sm:$0x1]
    %v731 = vadd.f32 %v728, %v730
    %vm732 = vcmask 253952
    %733 = vst.msk [vmem:[%s7] sm:$0x1] %vm732, %v731
    %s734 = sld [smem:[#allocation2 + $0x1]]
    %v735 = vld [vmem:[%s2] sm:$0x1]
    %s736 = scalar_lea.vmem %s4, %s734
    %v737 = vld [vmem:[%s736] sm:$0x1]
    %v740 = vunpack.c.l.s4 1983009808
    %v741 = vunpack.c.0.s8 %v740
    %v742 = vlaneseq
    %v743 = vshrl.u32 %v742, 7
    %v744 = vsub.s32 %v741, %v743
    %v745 = vrot.slane %v737, %v744
    %746 = vrot.lane.b32.xlu0 %v745, 32
    %v747 = vpop.permute.xlu0 %746
    %v749 = vadd.f32 %v735, %v747
    %vm750 = vcmask 516352
    %751 = vst.msk [vmem:[%s7] sm:$0x1] %vm750, %v749
    %s752 = sld [smem:[#allocation2 + $0x2]]
    %v753 = vld [vmem:[%s2] sm:$0x1]
    %s754 = scalar_lea.vmem %s4, %s752
    %v755 = vld [vmem:[%s754] sm:$0x1]
    %v758 = vunpack.c.l.s4 1983009808
    %v759 = vunpack.c.0.s8 %v758
    %v760 = vlaneseq
    %v761 = vshrl.u32 %v760, 7
    %v762 = vsub.s32 %v759, %v761
    %v763 = vrot.slane %v755, %v762
    %764 = vrot.lane.b32.xlu0 %v763, 64
    %v765 = vpop.permute.xlu0 %764
    %v767 = vadd.f32 %v753, %v765
    %vm768 = vcmask 778752
    %769 = vst.msk [vmem:[%s7] sm:$0x1] %vm768, %v767
    %s770 = sld [smem:[#allocation2 + $0x3]]
    %v771 = vld [vmem:[%s2] sm:$0x1]
    %s772 = scalar_lea.vmem %s4, %s770
    %v773 = vld [vmem:[%s772] sm:$0x1]
    %v776 = vunpack.c.l.s4 1983009808
    %v777 = vunpack.c.0.s8 %v776
    %v778 = vlaneseq
    %v779 = vshrl.u32 %v778, 7
    %v780 = vsub.s32 %v777, %v779
    %v781 = vrot.slane %v773, %v780
    %782 = vrot.lane.b32.xlu0 %v781, 96
    %v783 = vpop.permute.xlu0 %782
    %v785 = vadd.f32 %v771, %v783
    %vm786 = vcmask 1041152
    %787 = vst.msk [vmem:[%s7] sm:$0x1] %vm786, %v785
    %s788 = sld [smem:[#allocation2 + $0x4]]
    %v789 = vld [vmem:[%s2 + $0x2] sm:$0x1]
    %s790 = scalar_lea.vmem %s4, %s788
    %v791 = vld [vmem:[%s790] sm:$0x1]
    %v792 = vadd.f32 %v789, %v791
    %793 = vst.msk [vmem:[%s7 + $0x2] sm:$0x1] %vm732, %v792
    %s794 = sld [smem:[#allocation2 + $0x5]]
    %v795 = vld [vmem:[%s2 + $0x2] sm:$0x1]
    %s796 = scalar_lea.vmem %s4, %s794
    %v797 = vld [vmem:[%s796] sm:$0x1]
    %v800 = vunpack.c.l.s4 1983009808
    %v801 = vunpack.c.0.s8 %v800
    %v802 = vlaneseq
    %v803 = vshrl.u32 %v802, 7
    %v804 = vsub.s32 %v801, %v803
    %v805 = vrot.slane %v797, %v804
    %806 = vrot.lane.b32.xlu0 %v805, 32
    %v807 = vpop.permute.xlu0 %806
    %v809 = vadd.f32 %v795, %v807
    %810 = vst.msk [vmem:[%s7 + $0x2] sm:$0x1] %vm750, %v809
    %s811 = sld [smem:[#allocation2 + $0x6]]
    %v812 = vld [vmem:[%s2 + $0x2] sm:$0x1]
    %s813 = scalar_lea.vmem %s4, %s811
    %v814 = vld [vmem:[%s813] sm:$0x1]
    %v817 = vunpack.c.l.s4 1983009808
    %v818 = vunpack.c.0.s8 %v817
    %v819 = vlaneseq
    %v820 = vshrl.u32 %v819, 7
    %v821 = vsub.s32 %v818, %v820
    %v822 = vrot.slane %v814, %v821
    %823 = vrot.lane.b32.xlu0 %v822, 64
    %v824 = vpop.permute.xlu0 %823
    %v826 = vadd.f32 %v812, %v824
    %827 = vst.msk [vmem:[%s7 + $0x2] sm:$0x1] %vm768, %v826
    %s828 = sld [smem:[#allocation2 + $0x7]]
    %v829 = vld [vmem:[%s2 + $0x2] sm:$0x1]
    %s830 = scalar_lea.vmem %s4, %s828
    %v831 = vld [vmem:[%s830] sm:$0x1]
    %v834 = vunpack.c.l.s4 1983009808
    %v835 = vunpack.c.0.s8 %v834
    %v836 = vlaneseq
    %v837 = vshrl.u32 %v836, 7
    %v838 = vsub.s32 %v835, %v837
    %v839 = vrot.slane %v831, %v838
    %840 = vrot.lane.b32.xlu0 %v839, 96
    %v841 = vpop.permute.xlu0 %840
    %v843 = vadd.f32 %v829, %v841
    %844 = vst.msk [vmem:[%s7 + $0x2] sm:$0x1] %vm786, %v843
    %s845 = sld [smem:[#allocation2 + $0x80]]
    %v846 = vld [vmem:[%s2 + $0x1] sm:$0x1]
    %s847 = scalar_lea.vmem %s4, %s845
    %v848 = vld [vmem:[%s847] sm:$0x1]
    %v849 = vadd.f32 %v846, %v848
    %850 = vst.msk [vmem:[%s7 + $0x1] sm:$0x1] %vm732, %v849
    %s851 = sld [smem:[#allocation2 + $0x81]]
    %v852 = vld [vmem:[%s2 + $0x1] sm:$0x1]
    %s853 = scalar_lea.vmem %s4, %s851
    %v854 = vld [vmem:[%s853] sm:$0x1]
    %v857 = vunpack.c.l.s4 1983009808
    %v858 = vunpack.c.0.s8 %v857
    %v859 = vlaneseq
    %v860 = vshrl.u32 %v859, 7
    %v861 = vsub.s32 %v858, %v860
    %v862 = vrot.slane %v854, %v861
    %863 = vrot.lane.b32.xlu0 %v862, 32
    %v864 = vpop.permute.xlu0 %863
    %v866 = vadd.f32 %v852, %v864
    %867 = vst.msk [vmem:[%s7 + $0x1] sm:$0x1] %vm750, %v866
    %s868 = sld [smem:[#allocation2 + $0x82]]
    %v869 = vld [vmem:[%s2 + $0x1] sm:$0x1]
    %s870 = scalar_lea.vmem %s4, %s868
    %v871 = vld [vmem:[%s870] sm:$0x1]
    %v874 = vunpack.c.l.s4 1983009808
    %v875 = vunpack.c.0.s8 %v874
    %v876 = vlaneseq
    %v877 = vshrl.u32 %v876, 7
    %v878 = vsub.s32 %v875, %v877
    %v879 = vrot.slane %v871, %v878
    %880 = vrot.lane.b32.xlu0 %v879, 64
    %v881 = vpop.permute.xlu0 %880
    %v883 = vadd.f32 %v869, %v881
    %884 = vst.msk [vmem:[%s7 + $0x1] sm:$0x1] %vm768, %v883
    %s885 = sld [smem:[#allocation2 + $0x83]]
    %v886 = vld [vmem:[%s2 + $0x1] sm:$0x1]
    %s887 = scalar_lea.vmem %s4, %s885
    %v888 = vld [vmem:[%s887] sm:$0x1]
    %v891 = vunpack.c.l.s4 1983009808
    %v892 = vunpack.c.0.s8 %v891
    %v893 = vlaneseq
    %v894 = vshrl.u32 %v893, 7
    %v895 = vsub.s32 %v892, %v894
    %v896 = vrot.slane %v888, %v895
    %897 = vrot.lane.b32.xlu0 %v896, 96
    %v898 = vpop.permute.xlu0 %897
    %v900 = vadd.f32 %v886, %v898
    %901 = vst.msk [vmem:[%s7 + $0x1] sm:$0x1] %vm786, %v900
    %s902 = sld [smem:[#allocation2 + $0x84]]
    %v903 = vld [vmem:[%s2 + $0x3] sm:$0x1]
    %s904 = scalar_lea.vmem %s4, %s902
    %v905 = vld [vmem:[%s904] sm:$0x1]
    %v906 = vadd.f32 %v903, %v905
    %907 = vst.msk [vmem:[%s7 + $0x3] sm:$0x1] %vm732, %v906
    %s908 = sld [smem:[#allocation2 + $0x85]]
    %v909 = vld [vmem:[%s2 + $0x3] sm:$0x1]
    %s910 = scalar_lea.vmem %s4, %s908
    %v911 = vld [vmem:[%s910] sm:$0x1]
    %v914 = vunpack.c.l.s4 1983009808
    %v915 = vunpack.c.0.s8 %v914
    %v916 = vlaneseq
    %v917 = vshrl.u32 %v916, 7
    %v918 = vsub.s32 %v915, %v917
    %v919 = vrot.slane %v911, %v918
    %920 = vrot.lane.b32.xlu0 %v919, 32
    %v921 = vpop.permute.xlu0 %920
    %v923 = vadd.f32 %v909, %v921
    %924 = vst.msk [vmem:[%s7 + $0x3] sm:$0x1] %vm750, %v923
    %s925 = sld [smem:[#allocation2 + $0x86]]
    %v926 = vld [vmem:[%s2 + $0x3] sm:$0x1]
    %s927 = scalar_lea.vmem %s4, %s925
    %v928 = vld [vmem:[%s927] sm:$0x1]
    %v931 = vunpack.c.l.s4 1983009808
    %v932 = vunpack.c.0.s8 %v931
    %v933 = vlaneseq
    %v934 = vshrl.u32 %v933, 7
    %v935 = vsub.s32 %v932, %v934
    %v936 = vrot.slane %v928, %v935
    %937 = vrot.lane.b32.xlu0 %v936, 64
    %v938 = vpop.permute.xlu0 %937
    %v940 = vadd.f32 %v926, %v938
    %941 = vst.msk [vmem:[%s7 + $0x3] sm:$0x1] %vm768, %v940
    %s942 = sld [smem:[#allocation2 + $0x87]]
    %v943 = vld [vmem:[%s2 + $0x3] sm:$0x1]
    %s944 = scalar_lea.vmem %s4, %s942
    %v945 = vld [vmem:[%s944] sm:$0x1]
    %v948 = vunpack.c.l.s4 1983009808
    %v949 = vunpack.c.0.s8 %v948
    %v950 = vlaneseq
    %v951 = vshrl.u32 %v950, 7
    %v952 = vsub.s32 %v949, %v951
    %v953 = vrot.slane %v945, %v952
    %954 = vrot.lane.b32.xlu0 %v953, 96
    %v955 = vpop.permute.xlu0 %954
    %v957 = vadd.f32 %v943, %v955
    %958 = vst.msk [vmem:[%s7 + $0x3] sm:$0x1] %vm786, %v957
    // Predicated region
    $region26: #{rnova_decoder_forward.1} parent=1 // pred_check
      _
    $region27: #{rnova_decoder_forward.1} parent=1 // pred_check_branch
      %960 = sbr.rel (0) target = $region29
    $region28: #{rnova_decoder_forward.1} parent=1 // pred_region
      _
    $region29: #{rnova_decoder_forward.1} parent=1 // pred_fallthru
      _
    // Predicated region
    $region30: #{rnova_decoder_forward.1} parent=1 // pred_check
      _
    $region31: #{rnova_decoder_forward.1} parent=1 // pred_check_branch
      %962 = sbr.rel (0) target = $region33
    $region32: #{rnova_decoder_forward.1} parent=1 // pred_region
      _
    $region33: #{rnova_decoder_forward.1} parent=1 // pred_fallthru
      _
    // Predicated region
    $region34: #{rnova_decoder_forward.1} parent=1 // pred_check
      _
    $region35: #{rnova_decoder_forward.1} parent=1 // pred_check_branch
      %964 = sbr.rel (0) target = $region37
    $region36: #{rnova_decoder_forward.1} parent=1 // pred_region
      _
    $region37: #{rnova_decoder_forward.1} parent=1 // pred_fallthru
      _
    // Predicated region
    $region38: #{rnova_decoder_forward.1} parent=1 // pred_check
      _
    $region39: #{rnova_decoder_forward.1} parent=1 // pred_check_branch
      %966 = sbr.rel (0) target = $region41
    $region40: #{rnova_decoder_forward.1} parent=1 // pred_region
      _
    $region41: #{rnova_decoder_forward.1} parent=1 // pred_fallthru
      _
    // Predicated region
    $region42: #{rnova_decoder_forward.1} parent=1 // pred_check
      _
    $region43: #{rnova_decoder_forward.1} parent=1 // pred_check_branch
      %968 = sbr.rel (0) target = $region45
    $region44: #{rnova_decoder_forward.1} parent=1 // pred_region
      _
    $region45: #{rnova_decoder_forward.1} parent=1 // pred_fallthru
      _
    // Predicated region
    $region46: #{rnova_decoder_forward.1} parent=1 // pred_check
      _
    $region47: #{rnova_decoder_forward.1} parent=1 // pred_check_branch
      %970 = sbr.rel (0) target = $region49
    $region48: #{rnova_decoder_forward.1} parent=1 // pred_region
      _
    $region49: #{rnova_decoder_forward.1} parent=1 // pred_fallthru
      _
    %971 = vsyncpa [#allocation3], 1

</llo_original>
